<compile_context>
chip_gen: v5e
topology: v5e:2x2
jax: 0.10.0
libtpu: 0.0.40
codegen_flags: <defaults>
</compile_context>

<pallas_src>
import math
import jax
import jax.numpy as jnp
from jax.experimental import pallas as pl
from jax.experimental.pallas import tpu as pltpu

# ----------------------------- problem sizes -----------------------------
B, T, TK = 2, 8, 8          # batch, decoder steps, encoder steps
D, H, F = 32, 4, 64         # num_hiddens, num_heads, ffn_num_hiddens
DH = D // H                 # per-head dim
R = B * T                   # collapsed decoder rows  (16)
S2 = B * TK                 # collapsed encoder rows  (16)
S = R                       # keys per attention (== S2: shared mask geometry)
W = H * S                   # wide score lanes, all heads side by side (64)
EPS = 1e-5                  # nn.LayerNorm default eps
NEG = -1e6                  # d2l masked_softmax fill value
SCALE = 1.0 / math.sqrt(DH)

# MXU input dtype: bf16 cuts MXU passes ~3x on v6e/v7x and halves score-tile vregs,
# but is only worth it at real sizes; f32 keeps the 5e-3 check and v5e VPU safe.
MXU_DTYPE = jnp.float32

# -------- packed-slab row offsets (all multiples of 8 -> aligned views) --------
# 32-lane slab
O_WO1, O_WQ2, O_WO2 = 0, D, 2 * D
O_W2 = 3 * D
O_LNP = O_W2 + F
O_HM = O_LNP + 8
N32 = O_HM + W              # 232 rows
# 64-lane slab
P_WKV2 = 0
P_W1 = D
P_BB1 = 2 * D
P_SELF = P_BB1 + 8
P_CROSS = P_SELF + R
P_HELP = P_CROSS + R
P_BCAST = P_HELP + 8
N64 = P_BCAST + W           # 176 rows


# ----------------------------- kernel helpers -----------------------------
def _mm(a, b):
    return jnp.dot(a.astype(MXU_DTYPE), b.astype(MXU_DTYPE),
                   preferred_element_type=jnp.float32)


def _mm_nt(a, b):
    # a (m, k) contracted with b (n, k) along the feature axis -> (m, n).
    # NT-form matmul on the MXU: no jnp.transpose / XLU relayout on the chain.
    return jax.lax.dot_general(a.astype(MXU_DTYPE), b.astype(MXU_DTYPE),
                               dimension_numbers=(((1,), (1,)), ((), ())),
                               preferred_element_type=jnp.float32)


def _layernorm(x, gamma, beta):
    mu = jnp.mean(x, axis=-1, keepdims=True)
    var = jnp.mean((x - mu) ** 2, axis=-1, keepdims=True)
    return (x - mu) * jax.lax.rsqrt(var + EPS) * gamma + beta


def _attention(q, k, v, w_o, head_mask, add_mask, bcast):
    """All-heads attention with wide MXU matmuls (no per-head matmuls / concat).

    q: (R, D) projected queries; k, v: (S, D) projected keys / values.
    head_mask: (W, D) 0/1 constant; row w keeps only head (w // S)'s feature slice.
    add_mask:  (R, W) additive 0 / NEG score mask (causal / batch-block / valid-len).
    bcast:     (W, W) 0/1 constant (same-segment matrix); one MXU matmul computes
               and broadcasts every head's softmax denominator.
    """
    kx = jnp.tile(k, (H, 1)) * head_mask       # (W, D) head-replicated, off-head zeroed
    vx = jnp.tile(v, (H, 1)) * head_mask       # (W, D)

    s = _mm_nt(q, kx) * SCALE + add_mask       # (R, W): every head's scores
    # Single row-wide max (softmax is shift-invariant per segment) instead of H
    # per-segment XLU reductions; masked entries stay ~NEG and underflow to 0.
    s = s - jnp.max(s, axis=-1, keepdims=True)
    e = jnp.exp(s)
    denom = _mm(e, bcast)                      # per-head sums broadcast across segment
    p = e * pl.reciprocal(denom, approx=True)  # divide on the EUP
    o = _mm(p, vx)                             # (R, D): each head lands in its own lanes
    return _mm(o, w_o)


# ----------------------------- the fused kernel -----------------------------
def decoder_block_kernel(vl_ref,                 # SMEM (B,) int32 enc_valid_lens
                         xenc_ref,               # (R+S2, D)  [x ; enc_outputs]
                         wqkv1_ref,              # (D, 3D)
                         s32_ref,                # (N32, D)   packed 32-lane constants
                         s64_ref,                # (N64, F)   packed 64-lane constants
                         out_ref):               # (R, D)
    x = xenc_ref[0:R, :]
    enc = xenc_ref[R:R + S2, :]

    # Static, sublane-aligned views into the packed constant slabs.
    wo1 = s32_ref[O_WO1:O_WO1 + D, :]
    wq2 = s32_ref[O_WQ2:O_WQ2 + D, :]
    wo2 = s32_ref[O_WO2:O_WO2 + D, :]
    w2 = s32_ref[O_W2:O_W2 + F, :]
    lnp = s32_ref[O_LNP:O_LNP + 8, :]
    head_mask = s32_ref[O_HM:O_HM + W, :]
    g1, b1 = lnp[0:1, :], lnp[1:2, :]
    g2, b2 = lnp[2:3, :], lnp[3:4, :]
    g3, b3 = lnp[4:5, :], lnp[5:6, :]
    bb2 = lnp[6:7, :]

    wkv2 = s64_ref[P_WKV2:P_WKV2 + D, :]
    w1 = s64_ref[P_W1:P_W1 + D, :]
    bb1 = s64_ref[P_BB1:P_BB1 + 1, :]
    self_add = s64_ref[P_SELF:P_SELF + R, :]
    cross_static = s64_ref[P_CROSS:P_CROSS + R, :]
    helper = s64_ref[P_HELP:P_HELP + 8, :]
    bcast = s64_ref[P_BCAST:P_BCAST + W, :]
    keypos, kbrow = helper[0:1, :], helper[1:2, :]   # key position / key batch rows

    # ---- self-attention: causal within each batch, blocked across batches ----
    qkv = _mm(x, wqkv1_ref[...])                               # (R, 3D)
    q1, k1, v1 = qkv[:, :D], qkv[:, D:2 * D], qkv[:, 2 * D:]
    x2 = _attention(q1, k1, v1, wo1, head_mask, self_add, bcast)
    y = _layernorm(x + x2, g1, b1)                             # addnorm1

    # ---- cross-attention: keys masked by enc_valid_lens (dynamic part only) ----
    q2 = _mm(y, wq2)                                           # (R, D)
    kv2 = _mm(enc, wkv2)                                       # (S2, 2D)
    k2, v2 = kv2[:, :D], kv2[:, D:]
    vl0 = vl_ref[0].astype(jnp.float32)                        # B == 2 affine select
    vl1 = vl_ref[1].astype(jnp.float32)
    vlen_row = vl0 + (vl1 - vl0) * kbrow                       # (1, W) valid len per key col
    cross_add = cross_static + jnp.where(keypos >= vlen_row, NEG, 0.0)
    y2 = _attention(q2, k2, v2, wo2, head_mask, cross_add, bcast)
    z = _layernorm(y + y2, g2, b2)                             # addnorm2

    # ---- position-wise FFN + addnorm3 ----
    h1 = jnp.maximum(_mm(z, w1) + bb1, 0.0)
    f = _mm(h1, w2) + bb2
    out_ref[...] = _layernorm(z + f, g3, b3)


# ----------------------------- wrapper -----------------------------
def _pack_constants(params):
    """One-time packing of every constant operand (would live at param-init time)."""
    wi = jnp.arange(W)
    di = jnp.arange(D)
    ri = jnp.arange(R)

    # head replication mask (W, D): row w keeps only head (w // S)'s feature slice
    head_mask = ((wi[:, None] // S) == (di[None, :] // DH)).astype(jnp.float32)

    # additive self-attention mask: cross-batch OR future key
    kr = wi % S
    self_bad = (ri[:, None] // T != kr[None, :] // T) | (kr[None, :] % T > ri[:, None] % T)
    self_add = jnp.where(self_bad, NEG, 0.0).astype(jnp.float32)

    # additive static cross-attention mask: cross-batch keys
    kb = (wi % S2) // TK
    cross_bad = (ri[:, None] // T) != kb[None, :]
    cross_static = jnp.where(cross_bad, NEG, 0.0).astype(jnp.float32)

    # helper rows for the dynamic valid-len compare
    helper = jnp.zeros((8, W), jnp.float32)
    helper = helper.at[0].set(((wi % S2) % TK).astype(jnp.float32))   # key position in batch
    helper = helper.at[1].set(kb.astype(jnp.float32))                 # key batch (0/1)

    # per-head softmax-denominator sum+broadcast matrix (same-segment indicator)
    bcast = ((wi[:, None] // S) == (wi[None, :] // S)).astype(jnp.float32)

    lnp = jnp.concatenate([params["g1"], params["b1"], params["g2"], params["b2"],
                           params["g3"], params["b3"], params["bb2"],
                           jnp.zeros((1, D), jnp.float32)], axis=0)          # (8, D)

    slab32 = jnp.concatenate([params["wo1"], params["wq2"], params["wo2"],
                              params["w2"], lnp, head_mask], axis=0)         # (N32, D)

    wkv2 = jnp.concatenate([params["wk2"], params["wv2"]], axis=1)           # (D, 2D)
    bb1_pad = jnp.concatenate([params["bb1"], jnp.zeros((7, F), jnp.float32)], axis=0)
    slab64 = jnp.concatenate([wkv2, params["w1"], bb1_pad, self_add,
                              cross_static, helper, bcast], axis=0)          # (N64, F)

    wqkv1 = jnp.concatenate([params["wq1"], params["wk1"], params["wv1"]], axis=1)  # (D, 3D)

    assert slab32.shape == (N32, D) and slab64.shape == (N64, F)
    return wqkv1, slab32, slab64


def decoder_block_pallas(x, enc_outputs, enc_valid_lens, params):
    wqkv1, slab32, slab64 = _pack_constants(params)
    xenc = jnp.concatenate([x.reshape(R, D), enc_outputs.reshape(S2, D)], axis=0)  # (R+S2, D)

    vmem = pl.BlockSpec(memory_space=pltpu.MemorySpace.VMEM)
    smem = pl.BlockSpec(memory_space=pltpu.MemorySpace.SMEM)

    out = pl.pallas_call(
        decoder_block_kernel,
        out_shape=jax.ShapeDtypeStruct((R, D), jnp.float32),
        in_specs=[smem, vmem, vmem, vmem, vmem],   # 5 operands: no grid, no index_maps
        out_specs=vmem,
    )(enc_valid_lens.astype(jnp.int32), xenc, wqkv1, slab32, slab64)
    return out.reshape(B, T, D)


# ----------------------------- pure-JAX reference -----------------------------
def _ref_mha(q_in, kv_in, wq, wk, wv, wo, mask):
    Bq, Tq, _ = q_in.shape
    Tk = kv_in.shape[1]
    q = (q_in @ wq).reshape(Bq, Tq, H, DH).transpose(0, 2, 1, 3)
    k = (kv_in @ wk).reshape(Bq, Tk, H, DH).transpose(0, 2, 1, 3)
    v = (kv_in @ wv).reshape(Bq, Tk, H, DH).transpose(0, 2, 1, 3)
    s = jnp.einsum('bhqd,bhkd->bhqk', q, k) * SCALE
    s = jnp.where(mask[:, None, :, :], NEG, s)
    p = jax.nn.softmax(s, axis=-1)
    o = jnp.einsum('bhqk,bhkd->bhqd', p, v).transpose(0, 2, 1, 3).reshape(Bq, Tq, D)
    return o @ wo


def _ref_ln(x, gamma, beta):
    mu = jnp.mean(x, axis=-1, keepdims=True)
    var = jnp.mean((x - mu) ** 2, axis=-1, keepdims=True)
    return (x - mu) * jax.lax.rsqrt(var + EPS) * gamma + beta


def decoder_block_ref(x, enc_outputs, enc_valid_lens, p):
    causal = (jnp.arange(T)[None, :] > jnp.arange(T)[:, None])[None]
    causal = jnp.broadcast_to(causal, (B, T, T))
    x2 = _ref_mha(x, x, p["wq1"], p["wk1"], p["wv1"], p["wo1"], causal)
    y = _ref_ln(x + x2, p["g1"], p["b1"])
    enc_mask = jnp.arange(TK)[None, None, :] >= enc_valid_lens[:, None, None]
    enc_mask = jnp.broadcast_to(enc_mask, (B, T, TK))
    y2 = _ref_mha(y, enc_outputs, p["wq2"], p["wk2"], p["wv2"], p["wo2"], enc_mask)
    z = _ref_ln(y + y2, p["g2"], p["b2"])
    f = jnp.maximum(z @ p["w1"] + p["bb1"], 0.0) @ p["w2"] + p["bb2"]
    return _ref_ln(z + f, p["g3"], p["b3"])


# ----------------------------- main -----------------------------
if __name__ == "__main__":
    key = jax.random.PRNGKey(0)
    ks = jax.random.split(key, 16)

    x = jax.random.normal(ks[0], (B, T, D), dtype=jnp.float32)
    enc_outputs = jax.random.normal(ks[1], (B, TK, D), dtype=jnp.float32)
    enc_valid_lens = jnp.array([3, 2], dtype=jnp.int32)

    s = 0.1
    params = {
        "wq1": s * jax.random.normal(ks[2], (D, D), jnp.float32),
        "wk1": s * jax.random.normal(ks[3], (D, D), jnp.float32),
        "wv1": s * jax.random.normal(ks[4], (D, D), jnp.float32),
        "wo1": s * jax.random.normal(ks[5], (D, D), jnp.float32),
        "wq2": s * jax.random.normal(ks[6], (D, D), jnp.float32),
        "wk2": s * jax.random.normal(ks[7], (D, D), jnp.float32),
        "wv2": s * jax.random.normal(ks[8], (D, D), jnp.float32),
        "wo2": s * jax.random.normal(ks[9], (D, D), jnp.float32),
        "g1": jnp.ones((1, D), jnp.float32), "b1": jnp.zeros((1, D), jnp.float32),
        "g2": jnp.ones((1, D), jnp.float32), "b2": jnp.zeros((1, D), jnp.float32),
        "g3": jnp.ones((1, D), jnp.float32), "b3": jnp.zeros((1, D), jnp.float32),
        "w1": s * jax.random.normal(ks[10], (D, F), jnp.float32),
        "bb1": s * jax.random.normal(ks[11], (1, F), jnp.float32),
        "w2": s * jax.random.normal(ks[12], (F, D), jnp.float32),
        "bb2": s * jax.random.normal(ks[13], (1, D), jnp.float32),
    }

    out = decoder_block_pallas(x, enc_outputs, enc_valid_lens, params)
    out = jax.block_until_ready(out)

    ref = jax.block_until_ready(decoder_block_ref(x, enc_outputs, enc_valid_lens, params))
    assert out.shape == (B, T, D) and out.dtype == jnp.float32
    # The EUP approx reciprocal in the softmax contributes <~1e-3 relative error;
    # structural bugs would show up as O(0.1 - 1) deviations.
    assert jnp.allclose(out, ref, atol=5e-3, rtol=5e-3), "mismatch vs pure-JAX reference"

    print("KERNEL_OK")
</pallas_src>

<mosaic_0001>
module attributes {stable_mosaic.version = 11 : i64} {
  func.func @decoder_block_kernel(%arg0: memref<2xi32, #tpu.memory_space<smem>>, %arg1: memref<32x32xf32, #tpu.memory_space<vmem>>, %arg2: memref<32x96xf32, #tpu.memory_space<vmem>>, %arg3: memref<232x32xf32, #tpu.memory_space<vmem>>, %arg4: memref<176x64xf32, #tpu.memory_space<vmem>>, %arg5: memref<16x32xf32, #tpu.memory_space<vmem>>) attributes {dimension_semantics = [], scalar_prefetch = 0 : i64, scratch_operands = 0 : i64, tpu.core_type = #tpu.core_type<tc>} {
    %c0 = arith.constant 0 : index
    %c0_0 = arith.constant 0 : index
    %0 = vector.load %arg1[%c0, %c0_0] : memref<32x32xf32, #tpu.memory_space<vmem>>, vector<16x32xf32>
    %c16 = arith.constant 16 : index
    %c0_1 = arith.constant 0 : index
    %1 = vector.load %arg1[%c16, %c0_1] : memref<32x32xf32, #tpu.memory_space<vmem>>, vector<16x32xf32>
    %c0_2 = arith.constant 0 : index
    %c0_3 = arith.constant 0 : index
    %2 = vector.load %arg3[%c0_2, %c0_3] : memref<232x32xf32, #tpu.memory_space<vmem>>, vector<32x32xf32>
    %c32 = arith.constant 32 : index
    %c0_4 = arith.constant 0 : index
    %3 = vector.load %arg3[%c32, %c0_4] : memref<232x32xf32, #tpu.memory_space<vmem>>, vector<32x32xf32>
    %c64 = arith.constant 64 : index
    %c0_5 = arith.constant 0 : index
    %4 = vector.load %arg3[%c64, %c0_5] : memref<232x32xf32, #tpu.memory_space<vmem>>, vector<32x32xf32>
    %c96 = arith.constant 96 : index
    %c0_6 = arith.constant 0 : index
    %5 = vector.load %arg3[%c96, %c0_6] : memref<232x32xf32, #tpu.memory_space<vmem>>, vector<64x32xf32>
    %c160 = arith.constant 160 : index
    %c0_7 = arith.constant 0 : index
    %6 = vector.load %arg3[%c160, %c0_7] : memref<232x32xf32, #tpu.memory_space<vmem>>, vector<8x32xf32>
    %c168 = arith.constant 168 : index
    %c0_8 = arith.constant 0 : index
    %7 = vector.load %arg3[%c168, %c0_8] : memref<232x32xf32, #tpu.memory_space<vmem>>, vector<64x32xf32>
    %8 = vector.extract_strided_slice %6 {offsets = [0, 0], sizes = [1, 32], strides = [1, 1]} : vector<8x32xf32> to vector<1x32xf32>
    %9 = vector.extract_strided_slice %6 {offsets = [1, 0], sizes = [1, 32], strides = [1, 1]} : vector<8x32xf32> to vector<1x32xf32>
    %10 = vector.extract_strided_slice %6 {offsets = [2, 0], sizes = [1, 32], strides = [1, 1]} : vector<8x32xf32> to vector<1x32xf32>
    %11 = vector.extract_strided_slice %6 {offsets = [3, 0], sizes = [1, 32], strides = [1, 1]} : vector<8x32xf32> to vector<1x32xf32>
    %12 = vector.extract_strided_slice %6 {offsets = [4, 0], sizes = [1, 32], strides = [1, 1]} : vector<8x32xf32> to vector<1x32xf32>
    %13 = vector.extract_strided_slice %6 {offsets = [5, 0], sizes = [1, 32], strides = [1, 1]} : vector<8x32xf32> to vector<1x32xf32>
    %14 = vector.extract_strided_slice %6 {offsets = [6, 0], sizes = [1, 32], strides = [1, 1]} : vector<8x32xf32> to vector<1x32xf32>
    %c0_9 = arith.constant 0 : index
    %c0_10 = arith.constant 0 : index
    %15 = vector.load %arg4[%c0_9, %c0_10] : memref<176x64xf32, #tpu.memory_space<vmem>>, vector<32x64xf32>
    %c32_11 = arith.constant 32 : index
    %c0_12 = arith.constant 0 : index
    %16 = vector.load %arg4[%c32_11, %c0_12] : memref<176x64xf32, #tpu.memory_space<vmem>>, vector<32x64xf32>
    %c64_13 = arith.constant 64 : index
    %c0_14 = arith.constant 0 : index
    %17 = vector.load %arg4[%c64_13, %c0_14] : memref<176x64xf32, #tpu.memory_space<vmem>>, vector<1x64xf32>
    %c72 = arith.constant 72 : index
    %c0_15 = arith.constant 0 : index
    %18 = vector.load %arg4[%c72, %c0_15] : memref<176x64xf32, #tpu.memory_space<vmem>>, vector<16x64xf32>
    %c88 = arith.constant 88 : index
    %c0_16 = arith.constant 0 : index
    %19 = vector.load %arg4[%c88, %c0_16] : memref<176x64xf32, #tpu.memory_space<vmem>>, vector<16x64xf32>
    %c104 = arith.constant 104 : index
    %c0_17 = arith.constant 0 : index
    %20 = vector.load %arg4[%c104, %c0_17] : memref<176x64xf32, #tpu.memory_space<vmem>>, vector<8x64xf32>
    %c112 = arith.constant 112 : index
    %c0_18 = arith.constant 0 : index
    %21 = vector.load %arg4[%c112, %c0_18] : memref<176x64xf32, #tpu.memory_space<vmem>>, vector<64x64xf32>
    %22 = vector.extract_strided_slice %20 {offsets = [0, 0], sizes = [1, 64], strides = [1, 1]} : vector<8x64xf32> to vector<1x64xf32>
    %23 = vector.extract_strided_slice %20 {offsets = [1, 0], sizes = [1, 64], strides = [1, 1]} : vector<8x64xf32> to vector<1x64xf32>
    %c0_19 = arith.constant 0 : index
    %c0_20 = arith.constant 0 : index
    %24 = vector.load %arg2[%c0_19, %c0_20] : memref<32x96xf32, #tpu.memory_space<vmem>>, vector<32x96xf32>
    %cst = arith.constant dense<0.000000e+00> : vector<16x96xf32>
    %25 = tpu.matmul %0, %24, %cst {dimension_numbers = #tpu.dot_dimension_numbers<[1], [0], [0], [1], [0, 0, 1, 1], [], []>} : vector<16x32xf32>, vector<32x96xf32>, vector<16x96xf32> -> vector<16x96xf32>
    %26 = vector.extract_strided_slice %25 {offsets = [0, 0], sizes = [16, 32], strides = [1, 1]} : vector<16x96xf32> to vector<16x32xf32>
    %27 = vector.extract_strided_slice %25 {offsets = [0, 32], sizes = [16, 32], strides = [1, 1]} : vector<16x96xf32> to vector<16x32xf32>
    %28 = vector.extract_strided_slice %25 {offsets = [0, 64], sizes = [16, 32], strides = [1, 1]} : vector<16x96xf32> to vector<16x32xf32>
    %29 = tpu.concatenate %27, %27, %27, %27 in 0 : vector<16x32xf32>, vector<16x32xf32>, vector<16x32xf32>, vector<16x32xf32> -> vector<64x32xf32>
    %30 = arith.mulf %29, %7 : vector<64x32xf32>
    %31 = tpu.concatenate %28, %28, %28, %28 in 0 : vector<16x32xf32>, vector<16x32xf32>, vector<16x32xf32>, vector<16x32xf32> -> vector<64x32xf32>
    %32 = arith.mulf %31, %7 : vector<64x32xf32>
    %cst_21 = arith.constant dense<0.000000e+00> : vector<16x64xf32>
    %33 = tpu.matmul %26, %30, %cst_21 {dimension_numbers = #tpu.dot_dimension_numbers<[1], [1], [0], [0], [0, 0, 1, 0], [], []>} : vector<16x32xf32>, vector<64x32xf32>, vector<16x64xf32> -> vector<16x64xf32>
    %cst_22 = arith.constant 0.353553385 : f32
    %34 = vector.broadcast %cst_22 : f32 to vector<16x64xf32>
    %35 = arith.mulf %33, %34 : vector<16x64xf32>
    %36 = arith.addf %35, %18 : vector<16x64xf32>
    %cst_23 = arith.constant dense<0xFF800000> : vector<16xf32>
    %37 = vector.multi_reduction <maximumf>, %36, %cst_23 [1] : vector<16x64xf32> to vector<16xf32>
    %38 = vector.shape_cast %37 : vector<16xf32> to vector<16x1xf32>
    %39 = vector.broadcast %38 : vector<16x1xf32> to vector<16x64xf32>
    %40 = arith.subf %36, %39 : vector<16x64xf32>
    %41 = math.exp %40 : vector<16x64xf32>
    %cst_24 = arith.constant dense<0.000000e+00> : vector<16x64xf32>
    %42 = tpu.matmul %41, %21, %cst_24 {dimension_numbers = #tpu.dot_dimension_numbers<[1], [0], [0], [1], [0, 0, 1, 1], [], []>} : vector<16x64xf32>, vector<64x64xf32>, vector<16x64xf32> -> vector<16x64xf32>
    %43 = tpu.reciprocal %42 {approx = true} : vector<16x64xf32> -> vector<16x64xf32>
    %44 = arith.mulf %41, %43 : vector<16x64xf32>
    %cst_25 = arith.constant dense<0.000000e+00> : vector<16x32xf32>
    %45 = tpu.matmul %44, %32, %cst_25 {dimension_numbers = #tpu.dot_dimension_numbers<[1], [0], [0], [1], [0, 0, 1, 1], [], []>} : vector<16x64xf32>, vector<64x32xf32>, vector<16x32xf32> -> vector<16x32xf32>
    %cst_26 = arith.constant dense<0.000000e+00> : vector<16x32xf32>
    %46 = tpu.matmul %45, %2, %cst_26 {dimension_numbers = #tpu.dot_dimension_numbers<[1], [0], [0], [1], [0, 0, 1, 1], [], []>} : vector<16x32xf32>, vector<32x32xf32>, vector<16x32xf32> -> vector<16x32xf32>
    %47 = arith.addf %0, %46 : vector<16x32xf32>
    %cst_27 = arith.constant dense<0.000000e+00> : vector<16xf32>
    %48 = vector.multi_reduction <add>, %47, %cst_27 [1] : vector<16x32xf32> to vector<16xf32>
    %49 = vector.shape_cast %48 : vector<16xf32> to vector<16x1xf32>
    %cst_28 = arith.constant 3.200000e+01 : f32
    %50 = vector.broadcast %cst_28 : f32 to vector<16x1xf32>
    %51 = arith.divf %49, %50 : vector<16x1xf32>
    %52 = vector.broadcast %51 : vector<16x1xf32> to vector<16x32xf32>
    %53 = arith.subf %47, %52 : vector<16x32xf32>
    %54 = arith.mulf %53, %53 : vector<16x32xf32>
    %cst_29 = arith.constant dense<0.000000e+00> : vector<16xf32>
    %55 = vector.multi_reduction <add>, %54, %cst_29 [1] : vector<16x32xf32> to vector<16xf32>
    %56 = vector.shape_cast %55 : vector<16xf32> to vector<16x1xf32>
    %cst_30 = arith.constant 3.200000e+01 : f32
    %57 = vector.broadcast %cst_30 : f32 to vector<16x1xf32>
    %58 = arith.divf %56, %57 : vector<16x1xf32>
    %59 = vector.broadcast %51 : vector<16x1xf32> to vector<16x32xf32>
    %60 = arith.subf %47, %59 : vector<16x32xf32>
    %cst_31 = arith.constant 9.99999974E-6 : f32
    %61 = vector.broadcast %cst_31 : f32 to vector<16x1xf32>
    %62 = arith.addf %58, %61 : vector<16x1xf32>
    %63 = math.rsqrt %62 : vector<16x1xf32>
    %64 = vector.broadcast %63 : vector<16x1xf32> to vector<16x32xf32>
    %65 = arith.mulf %60, %64 : vector<16x32xf32>
    %66 = vector.broadcast %8 : vector<1x32xf32> to vector<16x32xf32>
    %67 = arith.mulf %65, %66 : vector<16x32xf32>
    %68 = vector.broadcast %9 : vector<1x32xf32> to vector<16x32xf32>
    %69 = arith.addf %67, %68 : vector<16x32xf32>
    %cst_32 = arith.constant dense<0.000000e+00> : vector<16x32xf32>
    %70 = tpu.matmul %69, %3, %cst_32 {dimension_numbers = #tpu.dot_dimension_numbers<[1], [0], [0], [1], [0, 0, 1, 1], [], []>} : vector<16x32xf32>, vector<32x32xf32>, vector<16x32xf32> -> vector<16x32xf32>
    %cst_33 = arith.constant dense<0.000000e+00> : vector<16x64xf32>
    %71 = tpu.matmul %1, %15, %cst_33 {dimension_numbers = #tpu.dot_dimension_numbers<[1], [0], [0], [1], [0, 0, 1, 1], [], []>} : vector<16x32xf32>, vector<32x64xf32>, vector<16x64xf32> -> vector<16x64xf32>
    %72 = vector.extract_strided_slice %71 {offsets = [0, 0], sizes = [16, 32], strides = [1, 1]} : vector<16x64xf32> to vector<16x32xf32>
    %73 = vector.extract_strided_slice %71 {offsets = [0, 32], sizes = [16, 32], strides = [1, 1]} : vector<16x64xf32> to vector<16x32xf32>
    %c0_34 = arith.constant 0 : index
    %74 = memref.load %arg0[%c0_34] : memref<2xi32, #tpu.memory_space<smem>>
    %75 = arith.sitofp %74 : i32 to f32
    %c1 = arith.constant 1 : index
    %76 = memref.load %arg0[%c1] : memref<2xi32, #tpu.memory_space<smem>>
    %77 = arith.sitofp %76 : i32 to f32
    %78 = arith.subf %77, %75 : f32
    %79 = vector.broadcast %78 : f32 to vector<1x64xf32>
    %80 = arith.mulf %79, %23 : vector<1x64xf32>
    %81 = vector.broadcast %75 : f32 to vector<1x64xf32>
    %82 = arith.addf %81, %80 : vector<1x64xf32>
    %83 = arith.cmpf oge, %22, %82 : vector<1x64xf32>
    %cst_35 = arith.constant -1.000000e+06 : f32
    %cst_36 = arith.constant 0.000000e+00 : f32
    %84 = vector.broadcast %cst_35 : f32 to vector<1x64xf32>
    %85 = vector.broadcast %cst_36 : f32 to vector<1x64xf32>
    %86 = arith.select %83, %84, %85 : vector<1x64xi1>, vector<1x64xf32>
    %87 = vector.broadcast %86 : vector<1x64xf32> to vector<16x64xf32>
    %88 = arith.addf %19, %87 : vector<16x64xf32>
    %89 = tpu.concatenate %72, %72, %72, %72 in 0 : vector<16x32xf32>, vector<16x32xf32>, vector<16x32xf32>, vector<16x32xf32> -> vector<64x32xf32>
    %90 = arith.mulf %89, %7 : vector<64x32xf32>
    %91 = tpu.concatenate %73, %73, %73, %73 in 0 : vector<16x32xf32>, vector<16x32xf32>, vector<16x32xf32>, vector<16x32xf32> -> vector<64x32xf32>
    %92 = arith.mulf %91, %7 : vector<64x32xf32>
    %cst_37 = arith.constant dense<0.000000e+00> : vector<16x64xf32>
    %93 = tpu.matmul %70, %90, %cst_37 {dimension_numbers = #tpu.dot_dimension_numbers<[1], [1], [0], [0], [0, 0, 1, 0], [], []>} : vector<16x32xf32>, vector<64x32xf32>, vector<16x64xf32> -> vector<16x64xf32>
    %cst_38 = arith.constant 0.353553385 : f32
    %94 = vector.broadcast %cst_38 : f32 to vector<16x64xf32>
    %95 = arith.mulf %93, %94 : vector<16x64xf32>
    %96 = arith.addf %95, %88 : vector<16x64xf32>
    %cst_39 = arith.constant dense<0xFF800000> : vector<16xf32>
    %97 = vector.multi_reduction <maximumf>, %96, %cst_39 [1] : vector<16x64xf32> to vector<16xf32>
    %98 = vector.shape_cast %97 : vector<16xf32> to vector<16x1xf32>
    %99 = vector.broadcast %98 : vector<16x1xf32> to vector<16x64xf32>
    %100 = arith.subf %96, %99 : vector<16x64xf32>
    %101 = math.exp %100 : vector<16x64xf32>
    %cst_40 = arith.constant dense<0.000000e+00> : vector<16x64xf32>
    %102 = tpu.matmul %101, %21, %cst_40 {dimension_numbers = #tpu.dot_dimension_numbers<[1], [0], [0], [1], [0, 0, 1, 1], [], []>} : vector<16x64xf32>, vector<64x64xf32>, vector<16x64xf32> -> vector<16x64xf32>
    %103 = tpu.reciprocal %102 {approx = true} : vector<16x64xf32> -> vector<16x64xf32>
    %104 = arith.mulf %101, %103 : vector<16x64xf32>
    %cst_41 = arith.constant dense<0.000000e+00> : vector<16x32xf32>
    %105 = tpu.matmul %104, %92, %cst_41 {dimension_numbers = #tpu.dot_dimension_numbers<[1], [0], [0], [1], [0, 0, 1, 1], [], []>} : vector<16x64xf32>, vector<64x32xf32>, vector<16x32xf32> -> vector<16x32xf32>
    %cst_42 = arith.constant dense<0.000000e+00> : vector<16x32xf32>
    %106 = tpu.matmul %105, %4, %cst_42 {dimension_numbers = #tpu.dot_dimension_numbers<[1], [0], [0], [1], [0, 0, 1, 1], [], []>} : vector<16x32xf32>, vector<32x32xf32>, vector<16x32xf32> -> vector<16x32xf32>
    %107 = arith.addf %69, %106 : vector<16x32xf32>
    %cst_43 = arith.constant dense<0.000000e+00> : vector<16xf32>
    %108 = vector.multi_reduction <add>, %107, %cst_43 [1] : vector<16x32xf32> to vector<16xf32>
    %109 = vector.shape_cast %108 : vector<16xf32> to vector<16x1xf32>
    %cst_44 = arith.constant 3.200000e+01 : f32
    %110 = vector.broadcast %cst_44 : f32 to vector<16x1xf32>
    %111 = arith.divf %109, %110 : vector<16x1xf32>
    %112 = vector.broadcast %111 : vector<16x1xf32> to vector<16x32xf32>
    %113 = arith.subf %107, %112 : vector<16x32xf32>
    %114 = arith.mulf %113, %113 : vector<16x32xf32>
    %cst_45 = arith.constant dense<0.000000e+00> : vector<16xf32>
    %115 = vector.multi_reduction <add>, %114, %cst_45 [1] : vector<16x32xf32> to vector<16xf32>
    %116 = vector.shape_cast %115 : vector<16xf32> to vector<16x1xf32>
    %cst_46 = arith.constant 3.200000e+01 : f32
    %117 = vector.broadcast %cst_46 : f32 to vector<16x1xf32>
    %118 = arith.divf %116, %117 : vector<16x1xf32>
    %119 = vector.broadcast %111 : vector<16x1xf32> to vector<16x32xf32>
    %120 = arith.subf %107, %119 : vector<16x32xf32>
    %cst_47 = arith.constant 9.99999974E-6 : f32
    %121 = vector.broadcast %cst_47 : f32 to vector<16x1xf32>
    %122 = arith.addf %118, %121 : vector<16x1xf32>
    %123 = math.rsqrt %122 : vector<16x1xf32>
    %124 = vector.broadcast %123 : vector<16x1xf32> to vector<16x32xf32>
    %125 = arith.mulf %120, %124 : vector<16x32xf32>
    %126 = vector.broadcast %10 : vector<1x32xf32> to vector<16x32xf32>
    %127 = arith.mulf %125, %126 : vector<16x32xf32>
    %128 = vector.broadcast %11 : vector<1x32xf32> to vector<16x32xf32>
    %129 = arith.addf %127, %128 : vector<16x32xf32>
    %cst_48 = arith.constant dense<0.000000e+00> : vector<16x64xf32>
    %130 = tpu.matmul %129, %16, %cst_48 {dimension_numbers = #tpu.dot_dimension_numbers<[1], [0], [0], [1], [0, 0, 1, 1], [], []>} : vector<16x32xf32>, vector<32x64xf32>, vector<16x64xf32> -> vector<16x64xf32>
    %131 = vector.broadcast %17 : vector<1x64xf32> to vector<16x64xf32>
    %132 = arith.addf %130, %131 : vector<16x64xf32>
    %cst_49 = arith.constant 0.000000e+00 : f32
    %133 = vector.broadcast %cst_49 : f32 to vector<16x64xf32>
    %134 = arith.maximumf %132, %133 : vector<16x64xf32>
    %cst_50 = arith.constant dense<0.000000e+00> : vector<16x32xf32>
    %135 = tpu.matmul %134, %5, %cst_50 {dimension_numbers = #tpu.dot_dimension_numbers<[1], [0], [0], [1], [0, 0, 1, 1], [], []>} : vector<16x64xf32>, vector<64x32xf32>, vector<16x32xf32> -> vector<16x32xf32>
    %136 = vector.broadcast %14 : vector<1x32xf32> to vector<16x32xf32>
    %137 = arith.addf %135, %136 : vector<16x32xf32>
    %138 = arith.addf %129, %137 : vector<16x32xf32>
    %cst_51 = arith.constant dense<0.000000e+00> : vector<16xf32>
    %139 = vector.multi_reduction <add>, %138, %cst_51 [1] : vector<16x32xf32> to vector<16xf32>
    %140 = vector.shape_cast %139 : vector<16xf32> to vector<16x1xf32>
    %cst_52 = arith.constant 3.200000e+01 : f32
    %141 = vector.broadcast %cst_52 : f32 to vector<16x1xf32>
    %142 = arith.divf %140, %141 : vector<16x1xf32>
    %143 = vector.broadcast %142 : vector<16x1xf32> to vector<16x32xf32>
    %144 = arith.subf %138, %143 : vector<16x32xf32>
    %145 = arith.mulf %144, %144 : vector<16x32xf32>
    %cst_53 = arith.constant dense<0.000000e+00> : vector<16xf32>
    %146 = vector.multi_reduction <add>, %145, %cst_53 [1] : vector<16x32xf32> to vector<16xf32>
    %147 = vector.shape_cast %146 : vector<16xf32> to vector<16x1xf32>
    %cst_54 = arith.constant 3.200000e+01 : f32
    %148 = vector.broadcast %cst_54 : f32 to vector<16x1xf32>
    %149 = arith.divf %147, %148 : vector<16x1xf32>
    %150 = vector.broadcast %142 : vector<16x1xf32> to vector<16x32xf32>
    %151 = arith.subf %138, %150 : vector<16x32xf32>
    %cst_55 = arith.constant 9.99999974E-6 : f32
    %152 = vector.broadcast %cst_55 : f32 to vector<16x1xf32>
    %153 = arith.addf %149, %152 : vector<16x1xf32>
    %154 = math.rsqrt %153 : vector<16x1xf32>
    %155 = vector.broadcast %154 : vector<16x1xf32> to vector<16x32xf32>
    %156 = arith.mulf %151, %155 : vector<16x32xf32>
    %157 = vector.broadcast %12 : vector<1x32xf32> to vector<16x32xf32>
    %158 = arith.mulf %156, %157 : vector<16x32xf32>
    %159 = vector.broadcast %13 : vector<1x32xf32> to vector<16x32xf32>
    %160 = arith.addf %158, %159 : vector<16x32xf32>
    %c0_56 = arith.constant 0 : index
    %c0_57 = arith.constant 0 : index
    %161 = vector.load %arg5[%c0_56, %c0_57] : memref<16x32xf32, #tpu.memory_space<vmem>>, vector<16x32xf32>
    tpu.vector_store %arg5[%c0_56, %c0_57], %160 {strides = array<i32>} : memref<16x32xf32, #tpu.memory_space<vmem>>, vector<16x32xf32>,
    return
  }
}

</mosaic_0001>

<llo_original>
// kernel: tpu_custom_call.1
$region0: #{tpu_custom_call.1}
  #allocation0 [shape = 'u32[]', space=smem, size = 0x4, offset = 0x4, fixed_abs, tag = 'smem constant byte address 0x4 - core index']
  #allocation1 [shape = 'u32[72,128]{1,0:T(1,128)}', space=vmem, size = 0x9000, scoped, tag = 'internal scratch']
  %s0 = inlined_call_operand.vmem [shape: s32[2], index: 0, kind: input, shape index: {}]
  %s1 = inlined_call_operand.vmem [shape: f32[32,32], index: 1, kind: input, shape index: {}]
  %s2 = inlined_call_operand.vmem [shape: f32[32,96], index: 2, kind: input, shape index: {}]
  %s3 = inlined_call_operand.vmem [shape: f32[232,32], index: 3, kind: input, shape index: {}]
  %s4 = inlined_call_operand.vmem [shape: f32[176,64], index: 4, kind: input, shape index: {}]
  %s5 = inlined_call_operand.hbm [shape: f32[16,32], index: 5, kind: output, shape index: {}]
  %s6 = sld [smem:[#allocation0]]
  $region34: #{tpu_custom_call.1} parent=0
    _
  %s8 = ssub.s32 1, %s6
  %s9 = scalar_select 0, %s8, %s6
  $region1: #{tpu_custom_call.1} parent=0
    #allocation2 [shape = 'u8[512]{0}', space=smem, size = 0x200, scoped, tag = 'input window, operand 0, single buffered']
    #allocation3 [shape = 's32[1]{0}', space=sflag, size = 0x4, scoped, tag = 'scoped memory for tpu_custom_call.1']
    #allocation4 [shape = 's32[1]{0}', space=sflag, size = 0x4, scoped, tag = 'scoped memory for tpu_custom_call.1']
    #allocation5 [shape = 'u8[8192]{0}', space=vmem, size = 0x2000, scoped, tag = 'output window, operand 0, single buffered']
    %10 = vsyncpa [#allocation4], 0
    %11 = vsyncpa [#allocation3], 0
    // Predicated region
    $region2: #{tpu_custom_call.1} parent=1 // pred_check
      _
    $region3: #{tpu_custom_call.1} parent=1 // pred_check_branch
      %13 = sbr.rel (0) target = $region5
    $region4: #{tpu_custom_call.1} parent=1 // pred_region
      %15 = vsyncadd [#allocation4], 0
      %s17 = sshll.u32 %s0, 4
      %s18 = int_to_ptr.vmem [resolvable:$true] %s17
      %20 = dma.vmem_to_smem %s18, 16, [#allocation2], [#allocation4]
    $region5: #{tpu_custom_call.1} parent=1 // pred_fallthru
      _
    // Predicated region
    $region6: #{tpu_custom_call.1} parent=1 // pred_check
      _
    $region7: #{tpu_custom_call.1} parent=1 // pred_check_branch
      %22 = sbr.rel (0) target = $region9
    $region8: #{tpu_custom_call.1} parent=1 // pred_region
      _
    $region9: #{tpu_custom_call.1} parent=1 // pred_fallthru
      _
    // Predicated region
    $region10: #{tpu_custom_call.1} parent=1 // pred_check
      _
    $region11: #{tpu_custom_call.1} parent=1 // pred_check_branch
      %24 = sbr.rel (0) target = $region13
    $region12: #{tpu_custom_call.1} parent=1 // pred_region
      _
    $region13: #{tpu_custom_call.1} parent=1 // pred_fallthru
      _
    // Predicated region
    $region14: #{tpu_custom_call.1} parent=1 // pred_check
      _
    $region15: #{tpu_custom_call.1} parent=1 // pred_check_branch
      %26 = sbr.rel (0) target = $region17
    $region16: #{tpu_custom_call.1} parent=1 // pred_region
      _
    $region17: #{tpu_custom_call.1} parent=1 // pred_fallthru
      _
    // Predicated region
    $region18: #{tpu_custom_call.1} parent=1 // pred_check
      _
    $region19: #{tpu_custom_call.1} parent=1 // pred_check_branch
      %28 = sbr.rel (0) target = $region21
    $region20: #{tpu_custom_call.1} parent=1 // pred_region
      _
    $region21: #{tpu_custom_call.1} parent=1 // pred_fallthru
      _
    // Predicated region
    $region22: #{tpu_custom_call.1} parent=1 // pred_check
      _
    $region23: #{tpu_custom_call.1} parent=1 // pred_check_branch
      %30 = sbr.rel (0) target = $region25
    $region24: #{tpu_custom_call.1} parent=1 // pred_region
      %32 = dma.done [#allocation4], 16
    $region25: #{tpu_custom_call.1} parent=1 // pred_fallthru
      _
    %33 = sfence
    %v34 = vld [vmem:[%s1] sm:$0xff]
    %v35 = vld [vmem:[%s1 + $0x8] sm:$0xff]
    %v36 = vld [vmem:[%s1 + $0x10] sm:$0xff]
    %v37 = vld [vmem:[%s1 + $0x18] sm:$0xff]
    %v38 = vld [vmem:[%s3] sm:$0xff]
    %v39 = vld [vmem:[%s3 + $0x8] sm:$0xff]
    %v40 = vld [vmem:[%s3 + $0x10] sm:$0xff]
    %v41 = vld [vmem:[%s3 + $0x18] sm:$0xff]
    %v42 = vld [vmem:[%s3 + $0x20] sm:$0xff]
    %v43 = vld [vmem:[%s3 + $0x28] sm:$0xff]
    %v44 = vld [vmem:[%s3 + $0x30] sm:$0xff]
    %v45 = vld [vmem:[%s3 + $0x38] sm:$0xff]
    %v46 = vld [vmem:[%s3 + $0x40] sm:$0xff]
    %v47 = vld [vmem:[%s3 + $0x48] sm:$0xff]
    %v48 = vld [vmem:[%s3 + $0x50] sm:$0xff]
    %v49 = vld [vmem:[%s3 + $0x58] sm:$0xff]
    %v50 = vld [vmem:[%s3 + $0x60] sm:$0xff]
    %v51 = vld [vmem:[%s3 + $0x68] sm:$0xff]
    %v52 = vld [vmem:[%s3 + $0x70] sm:$0xff]
    %v53 = vld [vmem:[%s3 + $0x78] sm:$0xff]
    %v54 = vld [vmem:[%s3 + $0x80] sm:$0xff]
    %v55 = vld [vmem:[%s3 + $0x88] sm:$0xff]
    %v56 = vld [vmem:[%s3 + $0x90] sm:$0xff]
    %v57 = vld [vmem:[%s3 + $0x98] sm:$0xff]
    %v58 = vld [vmem:[%s3 + $0xa0] sm:$0xff]
    %v59 = vld [vmem:[%s3 + $0xa8] sm:$0xff]
    %v60 = vld [vmem:[%s3 + $0xb0] sm:$0xff]
    %v61 = vld [vmem:[%s3 + $0xb8] sm:$0xff]
    %v62 = vld [vmem:[%s3 + $0xc0] sm:$0xff]
    %v63 = vld [vmem:[%s3 + $0xc8] sm:$0xff]
    %v64 = vld [vmem:[%s3 + $0xd0] sm:$0xff]
    %v65 = vld [vmem:[%s3 + $0xd8] sm:$0xff]
    %v66 = vld [vmem:[%s3 + $0xe0] sm:$0xff]
    %v67 = vld [vmem:[%s4] sm:$0xff]
    %v68 = vld [vmem:[%s4 + $0x8] sm:$0xff]
    %v69 = vld [vmem:[%s4 + $0x10] sm:$0xff]
    %v70 = vld [vmem:[%s4 + $0x18] sm:$0xff]
    %v71 = vld [vmem:[%s4 + $0x20] sm:$0xff]
    %v72 = vld [vmem:[%s4 + $0x28] sm:$0xff]
    %v73 = vld [vmem:[%s4 + $0x30] sm:$0xff]
    %v74 = vld [vmem:[%s4 + $0x38] sm:$0xff]
    %v75 = vld [vmem:[%s4 + $0x40] sm:$0x1]
    %v76 = vld [vmem:[%s4 + $0x48] sm:$0xff]
    %v77 = vld [vmem:[%s4 + $0x50] sm:$0xff]
    %v78 = vld [vmem:[%s4 + $0x58] sm:$0xff]
    %v79 = vld [vmem:[%s4 + $0x60] sm:$0xff]
    %v80 = vld [vmem:[%s4 + $0x68] sm:$0xff]
    %v81 = vld [vmem:[%s4 + $0x70] sm:$0xff]
    %v82 = vld [vmem:[%s4 + $0x78] sm:$0xff]
    %v83 = vld [vmem:[%s4 + $0x80] sm:$0xff]
    %v84 = vld [vmem:[%s4 + $0x88] sm:$0xff]
    %v85 = vld [vmem:[%s4 + $0x90] sm:$0xff]
    %v86 = vld [vmem:[%s4 + $0x98] sm:$0xff]
    %v87 = vld [vmem:[%s4 + $0xa0] sm:$0xff]
    %v88 = vld [vmem:[%s4 + $0xa8] sm:$0xff]
    %v89 = vld [vmem:[%s2] sm:$0xff]
    %v90 = vld [vmem:[%s2 + $0x8] sm:$0xff]
    %v91 = vld [vmem:[%s2 + $0x10] sm:$0xff]
    %v92 = vld [vmem:[%s2 + $0x18] sm:$0xff]
    %vm93 = vcmask 261120
    %v95 = vsel %vm93, %v34, 0
    %v98 = vsel %vm93, %v35, 0
    %100 = vmatpush.msra.mxu0 0.0
    %101 = vmatpush.msra.mxu0 0.0
    %102 = vmatpush.msra.mxu0 0.0
    %103 = vmatpush.msra.mxu0 0.0
    %104 = vmatpush.msra.mxu0 0.0
    %105 = vmatpush.msra.mxu0 0.0
    %106 = vmatpush.msra.mxu0 0.0
    %107 = vmatpush.msra.mxu0 0.0
    %108 = vmatpush.msra.mxu0 0.0
    %109 = vmatpush.msra.mxu0 0.0
    %110 = vmatpush.msra.mxu0 0.0
    %111 = vmatpush.msra.mxu0 0.0
    %112 = vmatpush.msra.mxu0 %v92
    %113 = vmatpush.msra.mxu0 %v91
    %114 = vmatpush.msra.mxu0 %v90
    %115 = vmatpush.msra.mxu0 %v89
    %116 = vmatmul.f32.gmra.mxu0 %v95
    %v117 = vpop.f32.mrf.mxu0
    %v118 = vadd.f32 0.0, %v117
    %119 = vmatmul.f32.gmra.mxu0 %v98
    %v120 = vpop.f32.mrf.mxu0
    %v121 = vadd.f32 0.0, %v120
    %122 = vdwg.mxu0
    %131 = vrot.lane.b32.xlu0 %v59, 32
    %v132 = vpop.permute.xlu0 %131
    %133 = vrot.lane.b32.xlu0 %v60, 32
    %v134 = vpop.permute.xlu0 %133
    %135 = vrot.lane.b32.xlu0 %v61, 32
    %v136 = vpop.permute.xlu0 %135
    %137 = vrot.lane.b32.xlu0 %v62, 32
    %v138 = vpop.permute.xlu0 %137
    %139 = vrot.lane.b32.xlu0 %v63, 32
    %v140 = vpop.permute.xlu0 %139
    %141 = vrot.lane.b32.xlu0 %v64, 32
    %v142 = vpop.permute.xlu0 %141
    %143 = vrot.lane.b32.xlu0 %v65, 32
    %v144 = vpop.permute.xlu0 %143
    %145 = vrot.lane.b32.xlu0 %v66, 32
    %v146 = vpop.permute.xlu0 %145
    %v155 = vmul.f32 %v118, %v132
    %v156 = vmul.f32 %v121, %v134
    %v157 = vmul.f32 %v118, %v136
    %v158 = vmul.f32 %v121, %v138
    %v159 = vmul.f32 %v118, %v140
    %v160 = vmul.f32 %v121, %v142
    %v161 = vmul.f32 %v118, %v144
    %v162 = vmul.f32 %v121, %v146
    %163 = vrot.lane.b32.xlu0 %v59, 64
    %v164 = vpop.permute.xlu0 %163
    %165 = vrot.lane.b32.xlu0 %v60, 64
    %v166 = vpop.permute.xlu0 %165
    %167 = vrot.lane.b32.xlu0 %v61, 64
    %v168 = vpop.permute.xlu0 %167
    %169 = vrot.lane.b32.xlu0 %v62, 64
    %v170 = vpop.permute.xlu0 %169
    %171 = vrot.lane.b32.xlu0 %v63, 64
    %v172 = vpop.permute.xlu0 %171
    %173 = vrot.lane.b32.xlu0 %v64, 64
    %v174 = vpop.permute.xlu0 %173
    %175 = vrot.lane.b32.xlu0 %v65, 64
    %v176 = vpop.permute.xlu0 %175
    %177 = vrot.lane.b32.xlu0 %v66, 64
    %v178 = vpop.permute.xlu0 %177
    %v187 = vmul.f32 %v118, %v164
    %v188 = vmul.f32 %v121, %v166
    %v189 = vmul.f32 %v118, %v168
    %v190 = vmul.f32 %v121, %v170
    %v191 = vmul.f32 %v118, %v172
    %v192 = vmul.f32 %v121, %v174
    %v193 = vmul.f32 %v118, %v176
    %v194 = vmul.f32 %v121, %v178
    %203 = vrot.lane.b32.xlu0 %v155, 96
    %v204 = vpop.permute.xlu0 %203
    %205 = vrot.lane.b32.xlu0 %v156, 96
    %v206 = vpop.permute.xlu0 %205
    %207 = vrot.lane.b32.xlu0 %v157, 96
    %v208 = vpop.permute.xlu0 %207
    %209 = vrot.lane.b32.xlu0 %v158, 96
    %v210 = vpop.permute.xlu0 %209
    %211 = vrot.lane.b32.xlu0 %v159, 96
    %v212 = vpop.permute.xlu0 %211
    %213 = vrot.lane.b32.xlu0 %v160, 96
    %v214 = vpop.permute.xlu0 %213
    %215 = vrot.lane.b32.xlu0 %v161, 96
    %v216 = vpop.permute.xlu0 %215
    %217 = vrot.lane.b32.xlu0 %v162, 96
    %v218 = vpop.permute.xlu0 %217
    %v220 = vsel %vm93, %v118, 0
    %v223 = vsel %vm93, %v121, 0
    %v225 = vsel %vm93, %v204, 0
    %v227 = vsel %vm93, %v206, 0
    %v229 = vsel %vm93, %v208, 0
    %v231 = vsel %vm93, %v210, 0
    %v233 = vsel %vm93, %v212, 0
    %v235 = vsel %vm93, %v214, 0
    %v237 = vsel %vm93, %v216, 0
    %v239 = vsel %vm93, %v218, 0
    %241 = vmatpush.xpose.msra.mxu0 0.0
    %242 = vmatpush.xpose.msra.mxu0 0.0
    %243 = vmatpush.xpose.msra.mxu0 0.0
    %244 = vmatpush.xpose.msra.mxu0 0.0
    %245 = vmatpush.xpose.msra.mxu0 0.0
    %246 = vmatpush.xpose.msra.mxu0 0.0
    %247 = vmatpush.xpose.msra.mxu0 0.0
    %248 = vmatpush.xpose.msra.mxu0 0.0
    %249 = vmatpush.xpose.msra.mxu0 %v239
    %250 = vmatpush.xpose.msra.mxu0 %v237
    %251 = vmatpush.xpose.msra.mxu0 %v235
    %252 = vmatpush.xpose.msra.mxu0 %v233
    %253 = vmatpush.xpose.msra.mxu0 %v231
    %254 = vmatpush.xpose.msra.mxu0 %v229
    %255 = vmatpush.xpose.msra.mxu0 %v227
    %256 = vmatpush.xpose.msra.mxu0 %v225
    %257 = vmatmul.f32.gmra.mxu0 %v220
    %v258 = vpop.f32.mrf.mxu0
    %v259 = vadd.f32 0.0, %v258
    %260 = vmatmul.f32.gmra.mxu0 %v223
    %v261 = vpop.f32.mrf.mxu0
    %v262 = vadd.f32 0.0, %v261
    %263 = vdwg.mxu0
    %v264 = vmul.f32 %v259, 0.35355338
    %v265 = vmul.f32 %v262, 0.35355338
    %v266 = vadd.f32 %v264, %v76
    %v267 = vadd.f32 %v265, %v77
    %vm268 = vcmask 523264
    %v269 = vsel %vm268, %v266, -inf
    %270 = vmax.xlane.f32.xlu0 %v269
    %v271 = vpop.xlane.xlu0 %270
    %v272 = vsel %vm268, %v267, -inf
    %273 = vmax.xlane.f32.xlu0 %v272
    %v274 = vpop.xlane.xlu0 %273
    %v275 = vsub.f32 %v266, %v271
    %v276 = vsub.f32 %v267, %v274
    %v277 = vmul.f32 %v275, 1.442695
    %v278 = vpow.pop %v277
    %v279 = vmul.f32 %v276, 1.442695
    %v280 = vpow.pop %v279
    %v282 = vsel %vm268, %v278, 0
    %v285 = vsel %vm268, %v280, 0
    %287 = vmatpush.msra.mxu0 0.0
    %288 = vmatpush.msra.mxu0 0.0
    %289 = vmatpush.msra.mxu0 0.0
    %290 = vmatpush.msra.mxu0 0.0
    %291 = vmatpush.msra.mxu0 0.0
    %292 = vmatpush.msra.mxu0 0.0
    %293 = vmatpush.msra.mxu0 0.0
    %294 = vmatpush.msra.mxu0 0.0
    %295 = vmatpush.msra.mxu0 %v88
    %296 = vmatpush.msra.mxu0 %v87
    %297 = vmatpush.msra.mxu0 %v86
    %298 = vmatpush.msra.mxu0 %v85
    %299 = vmatpush.msra.mxu0 %v84
    %300 = vmatpush.msra.mxu0 %v83
    %301 = vmatpush.msra.mxu0 %v82
    %302 = vmatpush.msra.mxu0 %v81
    %303 = vmatmul.f32.gmra.mxu0 %v282
    %v304 = vpop.f32.mrf.mxu0
    %v305 = vadd.f32 0.0, %v304
    %306 = vmatmul.f32.gmra.mxu0 %v285
    %v307 = vpop.f32.mrf.mxu0
    %v308 = vadd.f32 0.0, %v307
    %309 = vdwg.mxu0
    %v310 = vrcp.pop %v305
    %v311 = vrcp.pop %v308
    %v312 = vmul.f32 %v278, %v310
    %v313 = vmul.f32 %v280, %v311
    %322 = vrot.lane.b32.xlu0 %v187, 64
    %v323 = vpop.permute.xlu0 %322
    %324 = vrot.lane.b32.xlu0 %v188, 64
    %v325 = vpop.permute.xlu0 %324
    %326 = vrot.lane.b32.xlu0 %v189, 64
    %v327 = vpop.permute.xlu0 %326
    %328 = vrot.lane.b32.xlu0 %v190, 64
    %v329 = vpop.permute.xlu0 %328
    %330 = vrot.lane.b32.xlu0 %v191, 64
    %v331 = vpop.permute.xlu0 %330
    %332 = vrot.lane.b32.xlu0 %v192, 64
    %v333 = vpop.permute.xlu0 %332
    %334 = vrot.lane.b32.xlu0 %v193, 64
    %v335 = vpop.permute.xlu0 %334
    %336 = vrot.lane.b32.xlu0 %v194, 64
    %v337 = vpop.permute.xlu0 %336
    %v347 = vsel %vm268, %v312, 0
    %v350 = vsel %vm268, %v313, 0
    %352 = vmatpush.msra.mxu0 0.0
    %353 = vmatpush.msra.mxu0 0.0
    %354 = vmatpush.msra.mxu0 0.0
    %355 = vmatpush.msra.mxu0 0.0
    %356 = vmatpush.msra.mxu0 0.0
    %357 = vmatpush.msra.mxu0 0.0
    %358 = vmatpush.msra.mxu0 0.0
    %359 = vmatpush.msra.mxu0 0.0
    %360 = vmatpush.msra.mxu0 %v337
    %361 = vmatpush.msra.mxu0 %v335
    %362 = vmatpush.msra.mxu0 %v333
    %363 = vmatpush.msra.mxu0 %v331
    %364 = vmatpush.msra.mxu0 %v329
    %365 = vmatpush.msra.mxu0 %v327
    %366 = vmatpush.msra.mxu0 %v325
    %367 = vmatpush.msra.mxu0 %v323
    %368 = vmatmul.f32.gmra.mxu0 %v347
    %v369 = vpop.f32.mrf.mxu0
    %v370 = vadd.f32 0.0, %v369
    %371 = vmatmul.f32.gmra.mxu0 %v350
    %v372 = vpop.f32.mrf.mxu0
    %v373 = vadd.f32 0.0, %v372
    %374 = vdwg.mxu0
    %v376 = vsel %vm93, %v370, 0
    %v379 = vsel %vm93, %v373, 0
    %381 = vmatpush.msra.mxu0 0.0
    %382 = vmatpush.msra.mxu0 0.0
    %383 = vmatpush.msra.mxu0 0.0
    %384 = vmatpush.msra.mxu0 0.0
    %385 = vmatpush.msra.mxu0 0.0
    %386 = vmatpush.msra.mxu0 0.0
    %387 = vmatpush.msra.mxu0 0.0
    %388 = vmatpush.msra.mxu0 0.0
    %389 = vmatpush.msra.mxu0 0.0
    %390 = vmatpush.msra.mxu0 0.0
    %391 = vmatpush.msra.mxu0 0.0
    %392 = vmatpush.msra.mxu0 0.0
    %393 = vmatpush.msra.mxu0 %v41
    %394 = vmatpush.msra.mxu0 %v40
    %395 = vmatpush.msra.mxu0 %v39
    %396 = vmatpush.msra.mxu0 %v38
    %397 = vmatmul.f32.gmra.mxu0 %v376
    %v398 = vpop.f32.mrf.mxu0
    %v399 = vadd.f32 0.0, %v398
    %400 = vmatmul.f32.gmra.mxu0 %v379
    %v401 = vpop.f32.mrf.mxu0
    %v402 = vadd.f32 0.0, %v401
    %403 = vdwg.mxu0
    %v404 = vadd.f32 %v34, %v399
    %v405 = vadd.f32 %v35, %v402
    %v406 = vsel %vm93, %v404, 0.0
    %407 = vadd.xlane.f32.xlu0 %v406
    %v408 = vpop.xlane.xlu0 %407
    %v409 = vsel %vm93, %v405, 0.0
    %410 = vadd.xlane.f32.xlu0 %v409
    %v411 = vpop.xlane.xlu0 %410
    %v412 = vrcp.pop 32.0
    %v413 = vmul.f32 32.0, %v412
    %v414 = vsub.f32 1.0, %v413
    %v415 = vmul.f32 %v412, %v414
    %v416 = vadd.f32 %v412, %v415
    %vm417 = vweird.f32 %v412
    %v418 = vsel %vm417, %v412, %v416
    %v419 = vmul.f32 %v408, %v418
    %v420 = vmul.f32 %v411, %v418
    %v421 = vsub.f32 %v404, %v419
    %v422 = vsub.f32 %v405, %v420
    %v423 = vmul.f32 %v421, %v421
    %v424 = vmul.f32 %v422, %v422
    %v425 = vsel %vm93, %v423, 0.0
    %426 = vadd.xlane.f32.xlu0 %v425
    %v427 = vpop.xlane.xlu0 %426
    %v428 = vsel %vm93, %v424, 0.0
    %429 = vadd.xlane.f32.xlu0 %v428
    %v430 = vpop.xlane.xlu0 %429
    %v431 = vmul.f32 %v427, %v418
    %v432 = vmul.f32 %v430, %v418
    %v433 = vadd.f32 %v431, 1e-05
    %v434 = vadd.f32 %v432, 1e-05
    %v435 = vrsqrt.pop %v433
    %v436 = vmul.f32 %v435, %v433
    %v437 = vmul.f32 %v436, %v435
    %v438 = vmul.f32 0.5, %v437
    %v439 = vsub.f32 1.5, %v438
    %v440 = vmul.f32 %v435, %v439
    %vm441 = vweird.f32 %v433
    %vm442 = vweird.f32 %v435
    %vm443 = vmor %vm441, %vm442
    %v444 = vsel %vm443, %v435, %v440
    %v445 = vrsqrt.pop %v434
    %v446 = vmul.f32 %v445, %v434
    %v447 = vmul.f32 %v446, %v445
    %v448 = vmul.f32 0.5, %v447
    %v449 = vsub.f32 1.5, %v448
    %v450 = vmul.f32 %v445, %v449
    %vm451 = vweird.f32 %v434
    %vm452 = vweird.f32 %v445
    %vm453 = vmor %vm451, %vm452
    %v454 = vsel %vm453, %v445, %v450
    %v455 = vmul.f32 %v421, %v444
    %v456 = vmul.f32 %v422, %v454
    %v457 = vperm.slane %v58, 0
    %v458 = vmul.f32 %v455, %v457
    %v459 = vmul.f32 %v456, %v457
    %v460 = vperm.slane %v58, 1
    %v461 = vadd.f32 %v458, %v460
    %v462 = vadd.f32 %v459, %v460
    %v464 = vsel %vm93, %v461, 0
    %v467 = vsel %vm93, %v462, 0
    %469 = vmatpush.msra.mxu0 0.0
    %470 = vmatpush.msra.mxu0 0.0
    %471 = vmatpush.msra.mxu0 0.0
    %472 = vmatpush.msra.mxu0 0.0
    %473 = vmatpush.msra.mxu0 0.0
    %474 = vmatpush.msra.mxu0 0.0
    %475 = vmatpush.msra.mxu0 0.0
    %476 = vmatpush.msra.mxu0 0.0
    %477 = vmatpush.msra.mxu0 0.0
    %478 = vmatpush.msra.mxu0 0.0
    %479 = vmatpush.msra.mxu0 0.0
    %480 = vmatpush.msra.mxu0 0.0
    %481 = vmatpush.msra.mxu0 %v45
    %482 = vmatpush.msra.mxu0 %v44
    %483 = vmatpush.msra.mxu0 %v43
    %484 = vmatpush.msra.mxu0 %v42
    %485 = vmatmul.f32.gmra.mxu0 %v464
    %v486 = vpop.f32.mrf.mxu0
    %v487 = vadd.f32 0.0, %v486
    %488 = vmatmul.f32.gmra.mxu0 %v467
    %v489 = vpop.f32.mrf.mxu0
    %v490 = vadd.f32 0.0, %v489
    %491 = vdwg.mxu0
    %v493 = vsel %vm93, %v36, 0
    %v496 = vsel %vm93, %v37, 0
    %498 = vmatpush.msra.mxu0 0.0
    %499 = vmatpush.msra.mxu0 0.0
    %500 = vmatpush.msra.mxu0 0.0
    %501 = vmatpush.msra.mxu0 0.0
    %502 = vmatpush.msra.mxu0 0.0
    %503 = vmatpush.msra.mxu0 0.0
    %504 = vmatpush.msra.mxu0 0.0
    %505 = vmatpush.msra.mxu0 0.0
    %506 = vmatpush.msra.mxu0 0.0
    %507 = vmatpush.msra.mxu0 0.0
    %508 = vmatpush.msra.mxu0 0.0
    %509 = vmatpush.msra.mxu0 0.0
    %510 = vmatpush.msra.mxu0 %v70
    %511 = vmatpush.msra.mxu0 %v69
    %512 = vmatpush.msra.mxu0 %v68
    %513 = vmatpush.msra.mxu0 %v67
    %514 = vmatmul.f32.gmra.mxu0 %v493
    %v515 = vpop.f32.mrf.mxu0
    %v516 = vadd.f32 0.0, %v515
    %517 = vmatmul.f32.gmra.mxu0 %v496
    %v518 = vpop.f32.mrf.mxu0
    %v519 = vadd.f32 0.0, %v518
    %520 = vdwg.mxu0
    %s521 = sld [smem:[#allocation2]]
    %s522 = scvt.s32.f32 %s521
    %s523 = sld [smem:[#allocation2 + $0x1]]
    %s524 = scvt.s32.f32 %s523
    %s525 = ssub.f32 %s524, %s522
    %v526 = vstv %s525
    %v527 = vmul.f32 %v526, %v80
    %v528 = vstv %s522
    %v529 = vadd.f32 %v528, %v527
    %v531 = vrot.slane %v529, 1
    %vm533 = vcmp.ge.f32.partialorder %v80, %v531
    %v534 = vsel %vm533, -1000000.0, 0.0
    %v535 = vperm.slane %v534, 0
    %v536 = vadd.f32 %v78, %v535
    %v537 = vadd.f32 %v79, %v535
    %v538 = vmul.f32 %v516, %v59
    %v539 = vmul.f32 %v519, %v60
    %v540 = vmul.f32 %v516, %v61
    %v541 = vmul.f32 %v519, %v62
    %v542 = vmul.f32 %v516, %v63
    %v543 = vmul.f32 %v519, %v64
    %v544 = vmul.f32 %v516, %v65
    %v545 = vmul.f32 %v519, %v66
    %v546 = vmul.f32 %v516, %v132
    %v547 = vmul.f32 %v519, %v134
    %v548 = vmul.f32 %v516, %v136
    %v549 = vmul.f32 %v519, %v138
    %v550 = vmul.f32 %v516, %v140
    %v551 = vmul.f32 %v519, %v142
    %v552 = vmul.f32 %v516, %v144
    %v553 = vmul.f32 %v519, %v146
    %v555 = vsel %vm93, %v487, 0
    %v558 = vsel %vm93, %v490, 0
    %v561 = vsel %vm93, %v538, 0
    %v564 = vsel %vm93, %v539, 0
    %v567 = vsel %vm93, %v540, 0
    %v570 = vsel %vm93, %v541, 0
    %v573 = vsel %vm93, %v542, 0
    %v576 = vsel %vm93, %v543, 0
    %v579 = vsel %vm93, %v544, 0
    %v582 = vsel %vm93, %v545, 0
    %584 = vmatpush.xpose.msra.mxu0 0.0
    %585 = vmatpush.xpose.msra.mxu0 0.0
    %586 = vmatpush.xpose.msra.mxu0 0.0
    %587 = vmatpush.xpose.msra.mxu0 0.0
    %588 = vmatpush.xpose.msra.mxu0 0.0
    %589 = vmatpush.xpose.msra.mxu0 0.0
    %590 = vmatpush.xpose.msra.mxu0 0.0
    %591 = vmatpush.xpose.msra.mxu0 0.0
    %592 = vmatpush.xpose.msra.mxu0 %v582
    %593 = vmatpush.xpose.msra.mxu0 %v579
    %594 = vmatpush.xpose.msra.mxu0 %v576
    %595 = vmatpush.xpose.msra.mxu0 %v573
    %596 = vmatpush.xpose.msra.mxu0 %v570
    %597 = vmatpush.xpose.msra.mxu0 %v567
    %598 = vmatpush.xpose.msra.mxu0 %v564
    %599 = vmatpush.xpose.msra.mxu0 %v561
    %600 = vmatmul.f32.gmra.mxu0 %v555
    %v601 = vpop.f32.mrf.mxu0
    %v602 = vadd.f32 0.0, %v601
    %603 = vmatmul.f32.gmra.mxu0 %v558
    %v604 = vpop.f32.mrf.mxu0
    %v605 = vadd.f32 0.0, %v604
    %606 = vdwg.mxu0
    %v607 = vmul.f32 %v602, 0.35355338
    %v608 = vmul.f32 %v605, 0.35355338
    %v609 = vadd.f32 %v607, %v536
    %v610 = vadd.f32 %v608, %v537
    %v611 = vsel %vm268, %v609, -inf
    %612 = vmax.xlane.f32.xlu0 %v611
    %v613 = vpop.xlane.xlu0 %612
    %v614 = vsel %vm268, %v610, -inf
    %615 = vmax.xlane.f32.xlu0 %v614
    %v616 = vpop.xlane.xlu0 %615
    %v617 = vsub.f32 %v609, %v613
    %v618 = vsub.f32 %v610, %v616
    %v619 = vmul.f32 %v617, 1.442695
    %v620 = vpow.pop %v619
    %v621 = vmul.f32 %v618, 1.442695
    %v622 = vpow.pop %v621
    %v624 = vsel %vm268, %v620, 0
    %v627 = vsel %vm268, %v622, 0
    %629 = vmatpush.msra.mxu0 0.0
    %630 = vmatpush.msra.mxu0 0.0
    %631 = vmatpush.msra.mxu0 0.0
    %632 = vmatpush.msra.mxu0 0.0
    %633 = vmatpush.msra.mxu0 0.0
    %634 = vmatpush.msra.mxu0 0.0
    %635 = vmatpush.msra.mxu0 0.0
    %636 = vmatpush.msra.mxu0 0.0
    %637 = vmatpush.msra.mxu0 %v88
    %638 = vmatpush.msra.mxu0 %v87
    %639 = vmatpush.msra.mxu0 %v86
    %640 = vmatpush.msra.mxu0 %v85
    %641 = vmatpush.msra.mxu0 %v84
    %642 = vmatpush.msra.mxu0 %v83
    %643 = vmatpush.msra.mxu0 %v82
    %644 = vmatpush.msra.mxu0 %v81
    %645 = vmatmul.f32.gmra.mxu0 %v624
    %v646 = vpop.f32.mrf.mxu0
    %v647 = vadd.f32 0.0, %v646
    %648 = vmatmul.f32.gmra.mxu0 %v627
    %v649 = vpop.f32.mrf.mxu0
    %v650 = vadd.f32 0.0, %v649
    %651 = vdwg.mxu0
    %v652 = vrcp.pop %v647
    %v653 = vrcp.pop %v650
    %v654 = vmul.f32 %v620, %v652
    %v655 = vmul.f32 %v622, %v653
    %664 = vrot.lane.b32.xlu0 %v546, 96
    %v665 = vpop.permute.xlu0 %664
    %666 = vrot.lane.b32.xlu0 %v547, 96
    %v667 = vpop.permute.xlu0 %666
    %668 = vrot.lane.b32.xlu0 %v548, 96
    %v669 = vpop.permute.xlu0 %668
    %670 = vrot.lane.b32.xlu0 %v549, 96
    %v671 = vpop.permute.xlu0 %670
    %672 = vrot.lane.b32.xlu0 %v550, 96
    %v673 = vpop.permute.xlu0 %672
    %674 = vrot.lane.b32.xlu0 %v551, 96
    %v675 = vpop.permute.xlu0 %674
    %676 = vrot.lane.b32.xlu0 %v552, 96
    %v677 = vpop.permute.xlu0 %676
    %678 = vrot.lane.b32.xlu0 %v553, 96
    %v679 = vpop.permute.xlu0 %678
    %v689 = vsel %vm268, %v654, 0
    %v692 = vsel %vm268, %v655, 0
    %694 = vmatpush.msra.mxu0 0.0
    %695 = vmatpush.msra.mxu0 0.0
    %696 = vmatpush.msra.mxu0 0.0
    %697 = vmatpush.msra.mxu0 0.0
    %698 = vmatpush.msra.mxu0 0.0
    %699 = vmatpush.msra.mxu0 0.0
    %700 = vmatpush.msra.mxu0 0.0
    %701 = vmatpush.msra.mxu0 0.0
    %702 = vmatpush.msra.mxu0 %v679
    %703 = vmatpush.msra.mxu0 %v677
    %704 = vmatpush.msra.mxu0 %v675
    %705 = vmatpush.msra.mxu0 %v673
    %706 = vmatpush.msra.mxu0 %v671
    %707 = vmatpush.msra.mxu0 %v669
    %708 = vmatpush.msra.mxu0 %v667
    %709 = vmatpush.msra.mxu0 %v665
    %710 = vmatmul.f32.gmra.mxu0 %v689
    %v711 = vpop.f32.mrf.mxu0
    %v712 = vadd.f32 0.0, %v711
    %713 = vmatmul.f32.gmra.mxu0 %v692
    %v714 = vpop.f32.mrf.mxu0
    %v715 = vadd.f32 0.0, %v714
    %716 = vdwg.mxu0
    %v718 = vsel %vm93, %v712, 0
    %v721 = vsel %vm93, %v715, 0
    %723 = vmatpush.msra.mxu0 0.0
    %724 = vmatpush.msra.mxu0 0.0
    %725 = vmatpush.msra.mxu0 0.0
    %726 = vmatpush.msra.mxu0 0.0
    %727 = vmatpush.msra.mxu0 0.0
    %728 = vmatpush.msra.mxu0 0.0
    %729 = vmatpush.msra.mxu0 0.0
    %730 = vmatpush.msra.mxu0 0.0
    %731 = vmatpush.msra.mxu0 0.0
    %732 = vmatpush.msra.mxu0 0.0
    %733 = vmatpush.msra.mxu0 0.0
    %734 = vmatpush.msra.mxu0 0.0
    %735 = vmatpush.msra.mxu0 %v49
    %736 = vmatpush.msra.mxu0 %v48
    %737 = vmatpush.msra.mxu0 %v47
    %738 = vmatpush.msra.mxu0 %v46
    %739 = vmatmul.f32.gmra.mxu0 %v718
    %v740 = vpop.f32.mrf.mxu0
    %v741 = vadd.f32 0.0, %v740
    %742 = vmatmul.f32.gmra.mxu0 %v721
    %v743 = vpop.f32.mrf.mxu0
    %v744 = vadd.f32 0.0, %v743
    %745 = vdwg.mxu0
    %v746 = vadd.f32 %v461, %v741
    %v747 = vadd.f32 %v462, %v744
    %v748 = vsel %vm93, %v746, 0.0
    %749 = vadd.xlane.f32.xlu0 %v748
    %v750 = vpop.xlane.xlu0 %749
    %v751 = vsel %vm93, %v747, 0.0
    %752 = vadd.xlane.f32.xlu0 %v751
    %v753 = vpop.xlane.xlu0 %752
    %v754 = vmul.f32 %v750, %v418
    %v755 = vmul.f32 %v753, %v418
    %v756 = vsub.f32 %v746, %v754
    %v757 = vsub.f32 %v747, %v755
    %v758 = vmul.f32 %v756, %v756
    %v759 = vmul.f32 %v757, %v757
    %v760 = vsel %vm93, %v758, 0.0
    %761 = vadd.xlane.f32.xlu0 %v760
    %v762 = vpop.xlane.xlu0 %761
    %v763 = vsel %vm93, %v759, 0.0
    %764 = vadd.xlane.f32.xlu0 %v763
    %v765 = vpop.xlane.xlu0 %764
    %v766 = vmul.f32 %v762, %v418
    %v767 = vmul.f32 %v765, %v418
    %v768 = vadd.f32 %v766, 1e-05
    %v769 = vadd.f32 %v767, 1e-05
    %v770 = vrsqrt.pop %v768
    %v771 = vmul.f32 %v770, %v768
    %v772 = vmul.f32 %v771, %v770
    %v773 = vmul.f32 0.5, %v772
    %v774 = vsub.f32 1.5, %v773
    %v775 = vmul.f32 %v770, %v774
    %vm776 = vweird.f32 %v768
    %vm777 = vweird.f32 %v770
    %vm778 = vmor %vm776, %vm777
    %v779 = vsel %vm778, %v770, %v775
    %v780 = vrsqrt.pop %v769
    %v781 = vmul.f32 %v780, %v769
    %v782 = vmul.f32 %v781, %v780
    %v783 = vmul.f32 0.5, %v782
    %v784 = vsub.f32 1.5, %v783
    %v785 = vmul.f32 %v780, %v784
    %vm786 = vweird.f32 %v769
    %vm787 = vweird.f32 %v780
    %vm788 = vmor %vm786, %vm787
    %v789 = vsel %vm788, %v780, %v785
    %v790 = vmul.f32 %v756, %v779
    %v791 = vmul.f32 %v757, %v789
    %v792 = vperm.slane %v58, 2
    %v793 = vmul.f32 %v790, %v792
    %v794 = vmul.f32 %v791, %v792
    %v795 = vperm.slane %v58, 3
    %v796 = vadd.f32 %v793, %v795
    %v797 = vadd.f32 %v794, %v795
    %v798 = vperm.slane %v75, 0
    %v800 = vsel %vm93, %v796, 0
    %v803 = vsel %vm93, %v797, 0
    %805 = vmatpush.msra.mxu0 0.0
    %806 = vmatpush.msra.mxu0 0.0
    %807 = vmatpush.msra.mxu0 0.0
    %808 = vmatpush.msra.mxu0 0.0
    %809 = vmatpush.msra.mxu0 0.0
    %810 = vmatpush.msra.mxu0 0.0
    %811 = vmatpush.msra.mxu0 0.0
    %812 = vmatpush.msra.mxu0 0.0
    %813 = vmatpush.msra.mxu0 0.0
    %814 = vmatpush.msra.mxu0 0.0
    %815 = vmatpush.msra.mxu0 0.0
    %816 = vmatpush.msra.mxu0 0.0
    %817 = vmatpush.msra.mxu0 %v74
    %818 = vmatpush.msra.mxu0 %v73
    %819 = vmatpush.msra.mxu0 %v72
    %820 = vmatpush.msra.mxu0 %v71
    %821 = vmatmul.f32.gmra.mxu0 %v800
    %v822 = vpop.f32.mrf.mxu0
    %v823 = vadd.f32 %v798, %v822
    %824 = vmatmul.f32.gmra.mxu0 %v803
    %v825 = vpop.f32.mrf.mxu0
    %v826 = vadd.f32 %v798, %v825
    %827 = vdwg.mxu0
    %v828 = vmax.f32 %v823, 0.0
    %v829 = vmax.f32 %v826, 0.0
    %v830 = vperm.slane %v58, 6
    %v832 = vsel %vm268, %v828, 0
    %v835 = vsel %vm268, %v829, 0
    %837 = vmatpush.msra.mxu0 0.0
    %838 = vmatpush.msra.mxu0 0.0
    %839 = vmatpush.msra.mxu0 0.0
    %840 = vmatpush.msra.mxu0 0.0
    %841 = vmatpush.msra.mxu0 0.0
    %842 = vmatpush.msra.mxu0 0.0
    %843 = vmatpush.msra.mxu0 0.0
    %844 = vmatpush.msra.mxu0 0.0
    %845 = vmatpush.msra.mxu0 %v57
    %846 = vmatpush.msra.mxu0 %v56
    %847 = vmatpush.msra.mxu0 %v55
    %848 = vmatpush.msra.mxu0 %v54
    %849 = vmatpush.msra.mxu0 %v53
    %850 = vmatpush.msra.mxu0 %v52
    %851 = vmatpush.msra.mxu0 %v51
    %852 = vmatpush.msra.mxu0 %v50
    %853 = vmatmul.f32.gmra.mxu0 %v832
    %v854 = vpop.f32.mrf.mxu0
    %v855 = vadd.f32 %v830, %v854
    %856 = vmatmul.f32.gmra.mxu0 %v835
    %v857 = vpop.f32.mrf.mxu0
    %v858 = vadd.f32 %v830, %v857
    %859 = vdwg.mxu0
    %v860 = vadd.f32 %v796, %v855
    %v861 = vadd.f32 %v797, %v858
    %v862 = vsel %vm93, %v860, 0.0
    %863 = vadd.xlane.f32.xlu0 %v862
    %v864 = vpop.xlane.xlu0 %863
    %v865 = vsel %vm93, %v861, 0.0
    %866 = vadd.xlane.f32.xlu0 %v865
    %v867 = vpop.xlane.xlu0 %866
    %v868 = vmul.f32 %v864, %v418
    %v869 = vmul.f32 %v867, %v418
    %v870 = vsub.f32 %v860, %v868
    %v871 = vsub.f32 %v861, %v869
    %v872 = vmul.f32 %v870, %v870
    %v873 = vmul.f32 %v871, %v871
    %v874 = vsel %vm93, %v872, 0.0
    %875 = vadd.xlane.f32.xlu0 %v874
    %v876 = vpop.xlane.xlu0 %875
    %v877 = vsel %vm93, %v873, 0.0
    %878 = vadd.xlane.f32.xlu0 %v877
    %v879 = vpop.xlane.xlu0 %878
    %v880 = vmul.f32 %v876, %v418
    %v881 = vmul.f32 %v879, %v418
    %v882 = vadd.f32 %v880, 1e-05
    %v883 = vadd.f32 %v881, 1e-05
    %v884 = vrsqrt.pop %v882
    %v885 = vmul.f32 %v884, %v882
    %v886 = vmul.f32 %v885, %v884
    %v887 = vmul.f32 0.5, %v886
    %v888 = vsub.f32 1.5, %v887
    %v889 = vmul.f32 %v884, %v888
    %vm890 = vweird.f32 %v882
    %vm891 = vweird.f32 %v884
    %vm892 = vmor %vm890, %vm891
    %v893 = vsel %vm892, %v884, %v889
    %v894 = vrsqrt.pop %v883
    %v895 = vmul.f32 %v894, %v883
    %v896 = vmul.f32 %v895, %v894
    %v897 = vmul.f32 0.5, %v896
    %v898 = vsub.f32 1.5, %v897
    %v899 = vmul.f32 %v894, %v898
    %vm900 = vweird.f32 %v883
    %vm901 = vweird.f32 %v894
    %vm902 = vmor %vm900, %vm901
    %v903 = vsel %vm902, %v894, %v899
    %v904 = vmul.f32 %v870, %v893
    %v905 = vmul.f32 %v871, %v903
    %v906 = vperm.slane %v58, 4
    %v907 = vmul.f32 %v904, %v906
    %v908 = vmul.f32 %v905, %v906
    %v909 = vperm.slane %v58, 5
    %v910 = vadd.f32 %v907, %v909
    %v911 = vadd.f32 %v908, %v909
    %912 = vst.msk [vmem:[#allocation5] sm:$0xff] %vm93, %v910
    %913 = vst.msk [vmem:[#allocation5 + $0x8] sm:$0xff] %vm93, %v911
    // Predicated region
    $region26: #{tpu_custom_call.1} parent=1 // pred_check
      _
    $region27: #{tpu_custom_call.1} parent=1 // pred_check_branch
      %915 = sbr.rel (0) target = $region29
    $region28: #{tpu_custom_call.1} parent=1 // pred_region
      %917 = vsyncadd [#allocation3], 0
      %s918 = sshll.u32 [#allocation5], 4
      %s919 = int_to_ptr.vmem [resolvable:$true] %s918
      %s920 = sshll.u32 %s5, 4
      %s921 = int_to_ptr.hbm [resolvable:$true] %s920
      %926 = dma.vmem_to_hbm [thread:$0]  %s919, 256, %s921, [#allocation3], 128, 128, 8
    $region29: #{tpu_custom_call.1} parent=1 // pred_fallthru
      _
    // Predicated region
    $region30: #{tpu_custom_call.1} parent=1 // pred_check
      _
    $region31: #{tpu_custom_call.1} parent=1 // pred_check_branch
      %928 = sbr.rel (0) target = $region33
    $region32: #{tpu_custom_call.1} parent=1 // pred_region
      %930 = dma.done [#allocation3], 256
    $region33: #{tpu_custom_call.1} parent=1 // pred_fallthru
      _
    %931 = vsyncpa [#allocation3], 1
    %932 = vsyncpa [#allocation4], 1

</llo_original>
